<compile_context>
chip_gen: v7x
topology: tpu7x:2x2x1
jax: 0.10.0
libtpu: 0.0.40
codegen_flags: <defaults>
</compile_context>

<pallas_src>
import functools

import jax
import jax.numpy as jnp
from jax.experimental import pallas as pl
from jax.experimental.pallas import tpu as pltpu


def _round_up(x: int, m: int) -> int:
    return pl.cdiv(x, m) * m


def _vmem_cap_bytes() -> int:
    """3/4 of physical VMEM; conservative 48 MiB fallback (v7x has 64 MiB)."""
    phys = 64 << 20
    try:
        info = pltpu.get_tpu_info()
        for attr in ("vmem_capacity_bytes", "vmem_bytes", "vmem_size_bytes"):
            v = getattr(info, attr, None)
            if v:
                phys = int(v)
                break
    except Exception:
        pass
    return (phys * 3) // 4


def _vmem_budget_bytes(tb: int, h: int, a: int, a_pad: int) -> int:
    f32 = 4
    x_tiles = 2 * tb * h                      # double-buffered input tile
    w_res = 2 * (h * a_pad + 8 * a_pad)       # weight+bias (count double-buffered)
    out_tiles = 2 * (tb * a + tb)             # double-buffered narrow outputs
    interm = 4 * tb * a_pad                   # fused / logits / exp / logp live values
    return f32 * (x_tiles + w_res + out_tiles + interm) + (2 << 20)


def _fused_head_kernel(x_ref, w_ref, b_ref, logp_ref, val_ref, *, num_actions):
    """One batch tile: fused actor+critic matmul + masked log_softmax.

    x_ref:    (TB, H)       activations
    w_ref:    (H,  A_pad)   [W_a | W_v | 0-pad]   (resident)
    b_ref:    (1,  A_pad)   [b_a | b_v | 0-pad]   (resident)
    logp_ref: (TB, A)       log-probabilities
    val_ref:  (TB, 1)       V(s)
    """
    x = x_ref[...].astype(jnp.float32)

    # Single MXU pass computes actor logits AND critic value (fused columns).
    fused = jnp.dot(x, w_ref[...], preferred_element_type=jnp.float32)
    fused = fused + b_ref[...]                                   # (TB, A_pad)

    # Mask non-action lanes (value column + lane padding) out of the softmax.
    lane = jax.lax.broadcasted_iota(jnp.int32, fused.shape, 1)
    act_mask = lane < num_actions
    logits = jnp.where(act_mask, fused, jnp.float32(-jnp.inf))

    # Numerically-stable log_softmax over the real action lanes only.
    m = jnp.max(logits, axis=-1, keepdims=True)                  # (TB, 1)
    lse = jnp.log(jnp.sum(jnp.exp(logits - m), axis=-1, keepdims=True)) + m
    logp = logits - lse

    logp_ref[...] = logp[:, :num_actions].astype(logp_ref.dtype)
    val_ref[...] = fused[:, num_actions:num_actions + 1].astype(val_ref.dtype)


@functools.partial(jax.jit, static_argnames=("tb",))
def model_wrapper_forward(x, w_actor, b_actor, w_value, b_value, *, tb=1024):
    """x: (B, H) f32 -> (log_probs (B, A) f32, value (B, 1) f32)."""
    B, H = x.shape
    A = w_actor.shape[1]
    assert A >= 1, "need at least one action for the softmax"

    # ---- Fuse critic column + biases into one lane-dense weight slab. ----
    A_pad = _round_up(A + 1, 128)                   # actions + value column
    w_fused = jnp.zeros((H, A_pad), jnp.float32)
    w_fused = w_fused.at[:, :A].set(w_actor.astype(jnp.float32))
    w_fused = w_fused.at[:, A:A + 1].set(w_value.astype(jnp.float32))
    b_fused = jnp.zeros((1, A_pad), jnp.float32)
    b_fused = b_fused.at[:, :A].set(b_actor.reshape(1, A).astype(jnp.float32))
    b_fused = b_fused.at[:, A:A + 1].set(b_value.reshape(1, 1).astype(jnp.float32))

    # ---- Batch tile: sublane-aligned, >=2 grid steps when B allows it so the
    # "parallel" axis can shard across both v7x TensorCores.  No jnp.pad: the
    # grid uses cdiv and Pallas masks the ragged last block. ----
    TB = max(8, min(_round_up(tb, 8), _round_up(pl.cdiv(B, 2), 8)))

    # ---- Generation-aware VMEM budget: shrink TB rather than clamp. ----
    cap = _vmem_cap_bytes()
    while _vmem_budget_bytes(TB, H, A, A_pad) > cap and TB > 8:
        TB = max(8, _round_up(TB // 2, 8))
    vmem_bytes = int(min(cap, max(_vmem_budget_bytes(TB, H, A, A_pad), 8 << 20)))

    grid = (pl.cdiv(B, TB),)
    kernel = functools.partial(_fused_head_kernel, num_actions=A)

    log_probs, value = pl.pallas_call(
        kernel,
        out_shape=(
            jax.ShapeDtypeStruct((B, A), jnp.float32),
            jax.ShapeDtypeStruct((B, 1), jnp.float32),
        ),
        grid_spec=pltpu.PrefetchScalarGridSpec(
            num_scalar_prefetch=0,
            grid=grid,
            in_specs=[
                pl.BlockSpec((TB, H), lambda i: (i, 0)),       # x tile
                pl.BlockSpec((H, A_pad), lambda i: (0, 0)),    # fused W (resident)
                pl.BlockSpec((1, A_pad), lambda i: (0, 0)),    # fused bias (resident)
            ],
            out_specs=[
                pl.BlockSpec((TB, A), lambda i: (i, 0)),       # log-probs
                pl.BlockSpec((TB, 1), lambda i: (i, 0)),       # V(s)
            ],
        ),
        compiler_params=pltpu.CompilerParams(
            dimension_semantics=("parallel",),
            vmem_limit_bytes=vmem_bytes,
        ),
    )(x.astype(jnp.float32), w_fused, b_fused)

    return log_probs, value


def _reference(x, w_actor, b_actor, w_value, b_value):
    logits = x @ w_actor + b_actor
    return jax.nn.log_softmax(logits, axis=-1), x @ w_value + b_value


if __name__ == "__main__":
    H, A = 32, 16
    key = jax.random.PRNGKey(0)
    kx, ka, kba, kv, kbv, kx2 = jax.random.split(key, 6)

    # Deterministic synthetic parameters (no checkpoint loading).
    w_actor = 0.1 * jax.random.normal(ka, (H, A), dtype=jnp.float32)
    b_actor = 0.01 * jax.random.normal(kba, (1, A), dtype=jnp.float32)
    w_value = 0.1 * jax.random.normal(kv, (H, 1), dtype=jnp.float32)
    b_value = 0.01 * jax.random.normal(kbv, (1, 1), dtype=jnp.float32)

    # Case 1: tiny batch (single ragged tile, masked OOB rows exercised).
    B = 2
    x = jax.random.normal(kx, (B, H), dtype=jnp.float32)
    log_probs, value = model_wrapper_forward(x, w_actor, b_actor, w_value, b_value)
    jax.block_until_ready((log_probs, value))

    logp_ref, v_ref = _reference(x, w_actor, b_actor, w_value, b_value)
    assert jnp.allclose(log_probs, logp_ref, atol=1e-5), "actor mismatch"
    assert jnp.allclose(value, v_ref, atol=1e-5), "critic mismatch"
    assert jnp.allclose(jax.scipy.special.logsumexp(log_probs, axis=-1),
                        jnp.zeros((B,)), atol=1e-5)

    # Case 2: non-multiple batch with a small tile -> multi-step grid (ragged
    # last block, no padding copy).
    B2 = 20
    x2 = jax.random.normal(kx2, (B2, H), dtype=jnp.float32)
    log_probs2, value2 = model_wrapper_forward(
        x2, w_actor, b_actor, w_value, b_value, tb=8)
    jax.block_until_ready((log_probs2, value2))

    logp_ref2, v_ref2 = _reference(x2, w_actor, b_actor, w_value, b_value)
    assert jnp.allclose(log_probs2, logp_ref2, atol=1e-5), "actor mismatch (tiled)"
    assert jnp.allclose(value2, v_ref2, atol=1e-5), "critic mismatch (tiled)"
    assert jnp.allclose(jax.scipy.special.logsumexp(log_probs2, axis=-1),
                        jnp.zeros((B2,)), atol=1e-5)

    print("KERNEL_OK")
</pallas_src>

<mosaic_0001>
module attributes {stable_mosaic.version = 11 : i64} {
  func.func @_fused_head_kernel(%arg0: i32, %arg1: memref<8x32xf32, #tpu.memory_space<vmem>>, %arg2: memref<32x128xf32, #tpu.memory_space<vmem>>, %arg3: memref<1x128xf32, #tpu.memory_space<vmem>>, %arg4: memref<8x16xf32, #tpu.memory_space<vmem>>, %arg5: memref<8x1xf32, #tpu.memory_space<vmem>>) attributes {dimension_semantics = [#tpu.dimension_semantics<parallel>], iteration_bounds = array<i64: 1>, scalar_prefetch = 0 : i64, scratch_operands = 0 : i64, tpu.core_type = #tpu.core_type<tc>, window_params = [{transform_indices = @transform_0, window_bounds = array<i64: 8, 32>}, {pipeline_mode = #tpu.pipeline_mode<synchronous>, transform_indices = @transform_1, window_bounds = array<i64: 32, 128>}, {pipeline_mode = #tpu.pipeline_mode<synchronous>, transform_indices = @transform_2, window_bounds = array<i64: 1, 128>}, {transform_indices = @transform_3, window_bounds = array<i64: 8, 16>}, {transform_indices = @transform_4, window_bounds = array<i64: 8, 1>}]} {
    %c0 = arith.constant 0 : index
    %c0_0 = arith.constant 0 : index
    %0 = vector.load %arg1[%c0, %c0_0] : memref<8x32xf32, #tpu.memory_space<vmem>>, vector<8x32xf32>
    %c0_1 = arith.constant 0 : index
    %c0_2 = arith.constant 0 : index
    %1 = vector.load %arg2[%c0_1, %c0_2] : memref<32x128xf32, #tpu.memory_space<vmem>>, vector<32x128xf32>
    %cst = arith.constant dense<0.000000e+00> : vector<8x128xf32>
    %2 = tpu.matmul %0, %1, %cst {dimension_numbers = #tpu.dot_dimension_numbers<[1], [0], [0], [1], [0, 0, 1, 1], [], []>} : vector<8x32xf32>, vector<32x128xf32>, vector<8x128xf32> -> vector<8x128xf32>
    %c0_3 = arith.constant 0 : index
    %c0_4 = arith.constant 0 : index
    %3 = vector.load %arg3[%c0_3, %c0_4] : memref<1x128xf32, #tpu.memory_space<vmem>>, vector<1x128xf32>
    %4 = vector.broadcast %3 : vector<1x128xf32> to vector<8x128xf32>
    %5 = arith.addf %2, %4 : vector<8x128xf32>
    %6 = tpu.iota {dimensions = array<i32: 1>} : vector<8x128xi32>
    %c16_i32 = arith.constant 16 : i32
    %7 = vector.broadcast %c16_i32 : i32 to vector<8x128xi32>
    %8 = arith.cmpi slt, %6, %7 : vector<8x128xi32>
    %cst_5 = arith.constant 0xFF800000 : f32
    %9 = vector.broadcast %cst_5 : f32 to vector<8x128xf32>
    %10 = arith.select %8, %5, %9 : vector<8x128xi1>, vector<8x128xf32>
    %cst_6 = arith.constant dense<0xFF800000> : vector<8xf32>
    %11 = vector.multi_reduction <maximumf>, %10, %cst_6 [1] : vector<8x128xf32> to vector<8xf32>
    %12 = vector.shape_cast %11 : vector<8xf32> to vector<8x1xf32>
    %13 = vector.broadcast %12 : vector<8x1xf32> to vector<8x128xf32>
    %14 = arith.subf %10, %13 : vector<8x128xf32>
    %15 = math.exp %14 : vector<8x128xf32>
    %cst_7 = arith.constant dense<0.000000e+00> : vector<8xf32>
    %16 = vector.multi_reduction <add>, %15, %cst_7 [1] : vector<8x128xf32> to vector<8xf32>
    %17 = vector.shape_cast %16 : vector<8xf32> to vector<8x1xf32>
    %18 = math.log %17 : vector<8x1xf32>
    %19 = arith.addf %18, %12 : vector<8x1xf32>
    %20 = vector.broadcast %19 : vector<8x1xf32> to vector<8x128xf32>
    %21 = arith.subf %10, %20 : vector<8x128xf32>
    %22 = vector.extract_strided_slice %21 {offsets = [0, 0], sizes = [8, 16], strides = [1, 1]} : vector<8x128xf32> to vector<8x16xf32>
    %c0_8 = arith.constant 0 : index
    %c0_9 = arith.constant 0 : index
    %23 = vector.load %arg4[%c0_8, %c0_9] : memref<8x16xf32, #tpu.memory_space<vmem>>, vector<8x16xf32>
    tpu.vector_store %arg4[%c0_8, %c0_9], %22 {strides = array<i32>} : memref<8x16xf32, #tpu.memory_space<vmem>>, vector<8x16xf32>,
    %24 = vector.extract_strided_slice %5 {offsets = [0, 16], sizes = [8, 1], strides = [1, 1]} : vector<8x128xf32> to vector<8x1xf32>
    %c0_10 = arith.constant 0 : index
    %c0_11 = arith.constant 0 : index
    %25 = vector.load %arg5[%c0_10, %c0_11] : memref<8x1xf32, #tpu.memory_space<vmem>>, vector<8x1xf32>
    tpu.vector_store %arg5[%c0_10, %c0_11], %24 {strides = array<i32>} : memref<8x1xf32, #tpu.memory_space<vmem>>, vector<8x1xf32>,
    return
  }
  func.func @transform_0(%arg0: i32) -> (i32, i32) {
    %c0_i32 = arith.constant 0 : i32
    %c0_i32_0 = arith.constant 0 : i32
    return %arg0, %c0_i32 : i32, i32
  }
  func.func @transform_1(%arg0: i32) -> (i32, i32) {
    %c0_i32 = arith.constant 0 : i32
    %c0_i32_0 = arith.constant 0 : i32
    %c0_i32_1 = arith.constant 0 : i32
    return %c0_i32, %c0_i32_0 : i32, i32
  }
  func.func @transform_2(%arg0: i32) -> (i32, i32) {
    %c0_i32 = arith.constant 0 : i32
    %c0_i32_0 = arith.constant 0 : i32
    %c0_i32_1 = arith.constant 0 : i32
    return %c0_i32, %c0_i32_0 : i32, i32
  }
  func.func @transform_3(%arg0: i32) -> (i32, i32) {
    %c0_i32 = arith.constant 0 : i32
    %c0_i32_0 = arith.constant 0 : i32
    return %arg0, %c0_i32 : i32, i32
  }
  func.func @transform_4(%arg0: i32) -> (i32, i32) {
    %c0_i32 = arith.constant 0 : i32
    %c0_i32_0 = arith.constant 0 : i32
    return %arg0, %c0_i32 : i32, i32
  }
}

</mosaic_0001>

<llo_original>
// kernel: model_wrapper_forward.1
$region0: #{model_wrapper_forward.1}
  #allocation0 [shape = 'u32[]', space=smem, size = 0x4, offset = 0x4, fixed_abs, tag = 'smem constant byte address 0x4 - core index']
  #allocation1 [shape = 'u32[144,128]{1,0:T(1,128)}', space=vmem, size = 0x12000, scoped, tag = 'internal scratch']
  %s0 = inlined_call_operand.vmem [shape: f32[2,32], index: 0, kind: input, shape index: {}]
  %s1 = inlined_call_operand.vmem [shape: f32[32,128], index: 1, kind: input, shape index: {}]
  %s2 = inlined_call_operand.vmem [shape: f32[1,128], index: 2, kind: input, shape index: {}]
  %s3 = inlined_call_operand.hbm [shape: f32[2,16], index: 3, kind: output, shape index: {0}]
  %s4 = inlined_call_operand.vmem [shape: f32[2,1], index: 4, kind: output, shape index: {1}]
  %5 = xla_tuple %s3, %s4
  %s6 = sld [smem:[#allocation0]]
  $region60: #{model_wrapper_forward.1} parent=0
    _
  %s8 = ssub.s32 1, %s6
  %s9 = scalar_select 0, %s8, %s6
  $region1: #{model_wrapper_forward.1} parent=0
    #allocation2 [shape = 'u8[4096]{0}', space=vmem, size = 0x1000, scoped, tag = 'output window, operand 0, single buffered']
    #allocation3 [shape = 's32[1]{0}', space=sflag, size = 0x4, scoped, tag = 'scoped memory for model_wrapper_forward.1']
    #allocation4 [shape = 'u8[4096]{0}', space=vmem, size = 0x1000, scoped, tag = 'output window, operand 1, single buffered']
    %10 = vsyncpa [#allocation3], 0
    // Predicated region
    $region2: #{model_wrapper_forward.1} parent=1 // pred_check
      _
    $region3: #{model_wrapper_forward.1} parent=1 // pred_check_branch
      %12 = sbr.rel (0) target = $region5
    $region4: #{model_wrapper_forward.1} parent=1 // pred_region
      _
    $region5: #{model_wrapper_forward.1} parent=1 // pred_fallthru
      _
    // Predicated region
    $region6: #{model_wrapper_forward.1} parent=1 // pred_check
      _
    $region7: #{model_wrapper_forward.1} parent=1 // pred_check_branch
      %14 = sbr.rel (0) target = $region9
    $region8: #{model_wrapper_forward.1} parent=1 // pred_region
      _
    $region9: #{model_wrapper_forward.1} parent=1 // pred_fallthru
      _
    // Predicated region
    $region10: #{model_wrapper_forward.1} parent=1 // pred_check
      _
    $region11: #{model_wrapper_forward.1} parent=1 // pred_check_branch
      %16 = sbr.rel (0) target = $region13
    $region12: #{model_wrapper_forward.1} parent=1 // pred_region
      _
    $region13: #{model_wrapper_forward.1} parent=1 // pred_fallthru
      _
    %v17 = vld [vmem:[%s0] sm:$0xff]
    %v18 = vld [vmem:[%s1] sm:$0xff]
    %v19 = vld [vmem:[%s1 + $0x8] sm:$0xff]
    %v20 = vld [vmem:[%s1 + $0x10] sm:$0xff]
    %v21 = vld [vmem:[%s1 + $0x18] sm:$0xff]
    %v22 = vld [vmem:[%s2] sm:$0x1]
    %v24 = vlaneseq
    %v25 = vshrl.u32 %v24, 7
    %v26 = vsub.s32 0, %v25
    %v27 = vrot.slane %v22, %v26
    %vm29 = vcmask 261120
    %v31 = vsel %vm29, %v17, 0
    %33 = vmatprep.subr.mxu0 0.0
    %34 = vmatpush1.msra.mxu0 %v18
    %35 = vmatprep.subr.mxu0 0.0
    %36 = vmatpush1.msra.mxu0 %v19
    %37 = vmatprep.subr.mxu0 0.0
    %38 = vmatpush1.msra.mxu0 %v20
    %39 = vmatprep.subr.mxu0 0.0
    %40 = vmatpush1.msra.mxu0 %v21
    %41 = vmatprep.subr.mxu0 0.0
    %42 = vmatpush1.msra.mxu0 0.0
    %43 = vmatprep.subr.mxu0 0.0
    %44 = vmatpush1.msra.mxu0 0.0
    %45 = vmatprep.subr.mxu0 0.0
    %46 = vmatpush1.msra.mxu0 0.0
    %47 = vmatprep.subr.mxu0 0.0
    %48 = vmatpush1.msra.mxu0 0.0
    %49 = vmatprep.subr.mxu0 0.0
    %50 = vmatpush1.msra.mxu0 0.0
    %51 = vmatprep.subr.mxu0 0.0
    %52 = vmatpush1.msra.mxu0 0.0
    %53 = vmatprep.subr.mxu0 0.0
    %54 = vmatpush1.msra.mxu0 0.0
    %55 = vmatprep.subr.mxu0 0.0
    %56 = vmatpush1.msra.mxu0 0.0
    %57 = vmatprep.subr.mxu0 0.0
    %58 = vmatpush1.msra.mxu0 0.0
    %59 = vmatprep.subr.mxu0 0.0
    %60 = vmatpush1.msra.mxu0 0.0
    %61 = vmatprep.subr.mxu0 0.0
    %62 = vmatpush1.msra.mxu0 0.0
    %63 = vmatprep.subr.mxu0 0.0
    %64 = vmatpush1.msra.mxu0 0.0
    %65 = vmatprep.subr.mxu0 0.0
    %66 = vmatpush1.msra.mxu0 0.0
    %67 = vmatprep.subr.mxu0 0.0
    %68 = vmatpush1.msra.mxu0 0.0
    %69 = vmatprep.subr.mxu0 0.0
    %70 = vmatpush1.msra.mxu0 0.0
    %71 = vmatprep.subr.mxu0 0.0
    %72 = vmatpush1.msra.mxu0 0.0
    %73 = vmatprep.subr.mxu0 0.0
    %74 = vmatpush1.msra.mxu0 0.0
    %75 = vmatprep.subr.mxu0 0.0
    %76 = vmatpush1.msra.mxu0 0.0
    %77 = vmatprep.subr.mxu0 0.0
    %78 = vmatpush1.msra.mxu0 0.0
    %79 = vmatprep.subr.mxu0 0.0
    %80 = vmatpush1.msra.mxu0 0.0
    %81 = vmatprep.subr.mxu0 0.0
    %82 = vmatpush1.msra.mxu0 0.0
    %83 = vmatprep.subr.mxu0 0.0
    %84 = vmatpush1.msra.mxu0 0.0
    %85 = vmatprep.subr.mxu0 0.0
    %86 = vmatpush1.msra.mxu0 0.0
    %87 = vmatprep.subr.mxu0 0.0
    %88 = vmatpush1.msra.mxu0 0.0
    %89 = vmatprep.subr.mxu0 0.0
    %90 = vmatpush1.msra.mxu0 0.0
    %91 = vmatprep.subr.mxu0 0.0
    %92 = vmatpush1.msra.mxu0 0.0
    %93 = vmatprep.subr.mxu0 0.0
    %94 = vmatpush1.msra.mxu0 0.0
    %95 = vmatprep.subr.mxu0 0.0
    %96 = vmatpush1.msra.mxu0 0.0
    %97 = vmatprep.mubr.f32.mxu0 0.0
    %98 = vmatmul.mubr.f32.gmra.mrb[0].mxu0 %v31
    %v99 = vpop.f32.mrb[0].mxu0
    %v100 = vadd.f32 %v27, %v99
    %v101 = vpop.f32.mrb[0].mxu0
    %102 = vdwg.mxu0
    %v103 = vlaneseq
    %v104 = vand.u32 %v103, 127
    %vm105 = vcmp.lt.s32.totalorder %v104, 16
    %v106 = vsel %vm105, %v100, -inf
    %107 = vmax.xlane.f32.xlu0 %v106
    %v108 = vpop.xlane.xlu0 %107
    %v109 = vsub.f32 %v106, %v108
    %v110 = vmul.f32 %v109, 1.442695
    %v111 = vpow.pop %v110
    %112 = vadd.xlane.f32.xlu0 %v111
    %v113 = vpop.xlane.xlu0 %112
    %v114 = vlog2.pop %v113
    %v115 = vmul.f32 %v114, 0.6931472
    %v116 = vadd.f32 %v115, %v108
    %v117 = vsub.f32 %v106, %v116
    %vm118 = vcmask 130048
    %119 = vst.msk [vmem:[#allocation2] sm:$0xff] %vm118, %v117
    %121 = vrot.lane.b32.xlu0 %v100, 112
    %v122 = vpop.permute.xlu0 %121
    %vm124 = vcmask 7168
    %125 = vst.msk [vmem:[#allocation4] sm:$0xff] %vm124, %v122
    // Predicated region
    $region14: #{model_wrapper_forward.1} parent=1 // pred_check
      _
    $region15: #{model_wrapper_forward.1} parent=1 // pred_check_branch
      %127 = sbr.rel (0) target = $region17
    $region16: #{model_wrapper_forward.1} parent=1 // pred_region
      %s129 = ssub.s32 128, 32
      %130 = vsyncadd [#allocation3], %s129
      %s131 = sshll.u32 [#allocation2], 4
      %s132 = int_to_ptr.vmem [resolvable:$true] %s131
      %137 = dma.vmem_to_hbm [thread:$0]  %s132, 32, %s3, [#allocation3], 32, 32, 2
    $region17: #{model_wrapper_forward.1} parent=1 // pred_fallthru
      _
    // Predicated region
    $region18: #{model_wrapper_forward.1} parent=1 // pred_check
      _
    $region19: #{model_wrapper_forward.1} parent=1 // pred_check_branch
      %139 = sbr.rel (0) target = $region21
    $region20: #{model_wrapper_forward.1} parent=1 // pred_region
      // Predicated region
      $region22: #{model_wrapper_forward.1} parent=20 // pred_check
        _
      $region23: #{model_wrapper_forward.1} parent=20 // pred_check_branch
        %141 = sbr.rel (0) target = $region25
      $region24: #{model_wrapper_forward.1} parent=20 // pred_region
        // Predicated region
        $region26: #{model_wrapper_forward.1} parent=24 // pred_check
          _
        $region27: #{model_wrapper_forward.1} parent=24 // pred_check_branch
          %143 = sbr.rel target = $region29
        $region28: #{model_wrapper_forward.1} parent=24 // pred_region
          // Predicated region
          $region41: #{model_wrapper_forward.1} parent=28 // pred_check
            _
          $region42: #{model_wrapper_forward.1} parent=28 // pred_check_branch
            %158 = sbr.rel (0) target = $region44
          $region43: #{model_wrapper_forward.1} parent=28 // pred_region
            loop: start=0, step=1, limit=1
            $region45: #{model_wrapper_forward.1} parent=43 // loop_pre_header
              _
            $region46: #{model_wrapper_forward.1} parent=43 // loop_header
              %s161 = sphi 0, %s165
              %p162 = scmp.ge.s32.totalorder %s161, 1
              %s166 = sphi [#allocation4], [#allocation4]
              %s167 = sphi %s4, %s4
            $region47: #{model_wrapper_forward.1} parent=43 // loop_header_branch
              %164 = sbr.rel (%p162) target = $region51
            $region48: #{model_wrapper_forward.1} parent=43 // loop_body
              %v168 = vld [vmem:[%s166] sm:$0x3]
              %169 = vst [vmem:[%s167] sm:$0x3] %v168
            $region49: #{model_wrapper_forward.1} parent=43 // loop_footer
              %s165 = sadd.s32 1, %s161
            $region50: #{model_wrapper_forward.1} parent=43 // loop_footer_branch
              %160 = sbr.rel target = $region46
            $region51: #{model_wrapper_forward.1} parent=43 // loop_exit
              _
          $region44: #{model_wrapper_forward.1} parent=28 // pred_fallthru
            _
        $region29: #{model_wrapper_forward.1} parent=24 // pred_fallthru
          _
        // Predicated region
        $region30: #{model_wrapper_forward.1} parent=24 // pred_check
          _
        $region31: #{model_wrapper_forward.1} parent=24 // pred_check_branch
          %145 = sbr.rel (0) target = $region33
        $region32: #{model_wrapper_forward.1} parent=24 // pred_region
          loop: start=0, step=1, limit=1
          $region34: #{model_wrapper_forward.1} parent=32 // loop_pre_header
            _
          $region35: #{model_wrapper_forward.1} parent=32 // loop_header
            %s148 = sphi 0, %s152
            %p149 = scmp.ge.s32.totalorder %s148, 1
            %s153 = sphi [#allocation4], [#allocation4]
            %s154 = sphi %s4, %s4
          $region36: #{model_wrapper_forward.1} parent=32 // loop_header_branch
            %151 = sbr.rel (%p149) target = $region40
          $region37: #{model_wrapper_forward.1} parent=32 // loop_body
            %v155 = vld [vmem:[%s153] sm:$0x3]
            %156 = vst [vmem:[%s154] sm:$0x3] %v155
          $region38: #{model_wrapper_forward.1} parent=32 // loop_footer
            %s152 = sadd.s32 1, %s148
          $region39: #{model_wrapper_forward.1} parent=32 // loop_footer_branch
            %147 = sbr.rel target = $region35
          $region40: #{model_wrapper_forward.1} parent=32 // loop_exit
            _
        $region33: #{model_wrapper_forward.1} parent=24 // pred_fallthru
          _
      $region25: #{model_wrapper_forward.1} parent=20 // pred_fallthru
        _
      %170 = vnop
    $region21: #{model_wrapper_forward.1} parent=1 // pred_fallthru
      _
    // Predicated region
    $region52: #{model_wrapper_forward.1} parent=1 // pred_check
      _
    $region53: #{model_wrapper_forward.1} parent=1 // pred_check_branch
      %172 = sbr.rel (0) target = $region55
    $region54: #{model_wrapper_forward.1} parent=1 // pred_region
      %173 = dma.done [#allocation3], 128
    $region55: #{model_wrapper_forward.1} parent=1 // pred_fallthru
      _
    // Predicated region
    $region56: #{model_wrapper_forward.1} parent=1 // pred_check
      _
    $region57: #{model_wrapper_forward.1} parent=1 // pred_check_branch
      %175 = sbr.rel (0) target = $region59
    $region58: #{model_wrapper_forward.1} parent=1 // pred_region
      _
    $region59: #{model_wrapper_forward.1} parent=1 // pred_fallthru
      _
    %176 = vsyncpa [#allocation3], 1

</llo_original>
